<compile_context>
chip_gen: v7x
topology: tpu7x:2x2x1
jax: 0.10.0
libtpu: 0.0.40
codegen_flags: <defaults>
</compile_context>

<pallas_src>
import jax
import jax.numpy as jnp
from jax.experimental import pallas as pl
from jax.experimental.pallas import tpu as pltpu

_LANE = 128
_MAX_BLOCK_ROWS = 1024  # 1024 x 128 f32 = 512 KiB per block buffer


def _lsq_kernel(s_ref, x_ref, o_ref, *, thd_neg, thd_pos):
    # s_ref lives in SMEM: shape (1, 1) f32 scalar step size.
    s = s_ref[0, 0]
    y = x_ref[...].astype(jnp.float32) / s          # true divide (matches torch)
    y = jnp.clip(y, jnp.float32(thd_neg), jnp.float32(thd_pos))
    y = jnp.round(y)                                # round-half-to-even == torch.round
    o_ref[...] = (y * s).astype(o_ref.dtype)


class LsqQuanPallas:
    """JAX/Pallas port of LsqQuan (per_channel=False)."""

    def __init__(self, bit, all_positive=False, symmetric=False,
                 per_channel=False, weight=None, act=None):
        self.bit = bit
        self.act = act
        if all_positive:
            assert not symmetric, "Positive quantization cannot be symmetric"
            self.thd_neg = 0
            self.thd_pos = 2 ** bit - 1
        elif symmetric:
            self.thd_neg = -2 ** (bit - 1) + 1
            self.thd_pos = 2 ** (bit - 1) - 1
        else:
            self.thd_neg = -2 ** (bit - 1)
            self.thd_pos = 2 ** (bit - 1) - 1
        self.per_channel = per_channel
        # nn.Parameter(torch.ones(1))
        self.s = jnp.ones((1,), dtype=jnp.float32)
        if weight is not None:
            self.init_from(weight)

    def init_from(self, weight):
        if self.per_channel:
            # TODO(synk): per-channel step size not wired into the Pallas kernel;
            # only the scalar (per-tensor) path is used in __call__.
            axes = tuple(range(1, weight.ndim))
            self.s = (jnp.mean(jnp.abs(weight), axis=axes, keepdims=True)
                      * 2.0 / (self.thd_pos ** 0.5)).astype(jnp.float32)
        else:
            self.s = (jnp.mean(jnp.abs(weight)) * 2.0
                      / (self.thd_pos ** 0.5)).reshape((1,)).astype(jnp.float32)

    def __call__(self, x):
        if self.bit >= 32:
            if self.act is not None:
                x = self.act(x)
            return x
        if self.per_channel:
            raise NotImplementedError(
                "per_channel=True is not supported by the Pallas kernel")

        orig_shape = x.shape
        dtype = x.dtype
        total = x.size

        # Flatten to a lane-dense 2D slab in the ORIGINAL dtype.  Pad only if
        # the element count is not a multiple of the 128-lane width.
        pad = (-total) % _LANE
        x_flat = jnp.ravel(x)
        if pad:
            x_flat = jnp.concatenate([x_flat, jnp.zeros((pad,), dtype)])
        rows = x_flat.size // _LANE
        x2d = x_flat.reshape(rows, _LANE)

        # Block sizing: full slab if it is small, otherwise fixed-size blocks
        # (multiple of the sublane tiling) with a cdiv grid; Pallas masks the
        # ragged last block automatically.
        block_rows = rows if rows <= _MAX_BLOCK_ROWS else _MAX_BLOCK_ROWS
        grid = (pl.cdiv(rows, block_rows),)

        s_smem = jnp.reshape(self.s.astype(jnp.float32)[0], (1, 1))

        kernel = lambda s_ref, x_ref, o_ref: _lsq_kernel(
            s_ref, x_ref, o_ref, thd_neg=self.thd_neg, thd_pos=self.thd_pos)

        itemsize = jnp.dtype(dtype).itemsize
        cost = pl.CostEstimate(flops=4 * total, transcendentals=0,
                               bytes_accessed=2 * total * itemsize)

        out2d = pl.pallas_call(
            kernel,
            out_shape=jax.ShapeDtypeStruct((rows, _LANE), dtype),
            grid_spec=pltpu.PrefetchScalarGridSpec(
                num_scalar_prefetch=0,
                grid=grid,
                in_specs=[
                    pl.BlockSpec(memory_space=pltpu.SMEM),               # s scalar
                    pl.BlockSpec((block_rows, _LANE), lambda i: (i, 0)),  # x tile
                ],
                out_specs=pl.BlockSpec((block_rows, _LANE), lambda i: (i, 0)),
            ),
            compiler_params=pltpu.CompilerParams(
                dimension_semantics=("parallel",)),
            cost_estimate=cost,
        )(s_smem, x2d)

        if pad:
            out = out2d.reshape(-1)[:total].reshape(orig_shape)
        else:
            out = out2d.reshape(orig_shape)
        return out


def _reference(x, s, thd_neg, thd_pos):
    y = x.astype(jnp.float32) / jnp.float32(s)
    y = jnp.clip(y, jnp.float32(thd_neg), jnp.float32(thd_pos))
    y = jnp.round(y)
    return (y * jnp.float32(s)).astype(x.dtype)


if __name__ == "__main__":
    key = jax.random.PRNGKey(0)
    kx, kw, kx2, kx3 = jax.random.split(key, 4)

    # Deterministic synthetic "weight" to drive init_from (per-tensor step size).
    w = jax.random.normal(kw, (4, 4, 3, 3), dtype=jnp.float32)
    quant = LsqQuanPallas(bit=8, all_positive=False, symmetric=False,
                          per_channel=False, weight=w, act=None)
    s_val = float(quant.s[0])

    # 1) NCHW activation-like input (divisible by 128 -> no padding path).
    x = jax.random.normal(kx, (2, 4, 16, 16), dtype=jnp.float32)
    out = jax.block_until_ready(quant(x))
    ref = _reference(x, s_val, quant.thd_neg, quant.thd_pos)
    assert out.shape == x.shape and out.dtype == x.dtype
    assert jnp.allclose(out, ref, atol=1e-5, rtol=1e-5), "f32 mismatch vs reference"

    # 2) Larger input that exercises the multi-block grid (rows > block_rows).
    x_big = jax.random.normal(kx2, (8, 16, 64, 64), dtype=jnp.float32)
    out_big = jax.block_until_ready(quant(x_big))
    ref_big = _reference(x_big, s_val, quant.thd_neg, quant.thd_pos)
    assert jnp.allclose(out_big, ref_big, atol=1e-5, rtol=1e-5), "tiled mismatch"

    # 3) Ragged element count (exercises the pad/slice path) in bf16.
    x_rag = jax.random.normal(kx3, (3, 5, 7, 11), dtype=jnp.float32).astype(jnp.bfloat16)
    out_rag = jax.block_until_ready(quant(x_rag))
    ref_rag = _reference(x_rag, s_val, quant.thd_neg, quant.thd_pos)
    assert out_rag.dtype == jnp.bfloat16
    assert jnp.allclose(out_rag.astype(jnp.float32), ref_rag.astype(jnp.float32),
                        atol=1e-2, rtol=1e-2), "bf16 ragged mismatch"

    print("KERNEL_OK")
</pallas_src>

<mosaic_0001>
module attributes {stable_mosaic.version = 11 : i64} {
  func.func @_lambda_(%arg0: i32, %arg1: memref<1x1xf32, #tpu.memory_space<smem>>, %arg2: memref<16x128xf32, #tpu.memory_space<vmem>>, %arg3: memref<16x128xf32, #tpu.memory_space<vmem>>) attributes {dimension_semantics = [#tpu.dimension_semantics<parallel>], iteration_bounds = array<i64: 1>, scalar_prefetch = 0 : i64, scratch_operands = 0 : i64, tpu.core_type = #tpu.core_type<tc>, window_params = [{transform_indices = @transform_0, window_bounds = array<i64: 1, 1>}, {transform_indices = @transform_1, window_bounds = array<i64: 16, 128>}, {transform_indices = @transform_2, window_bounds = array<i64: 16, 128>}]} {
    %c0 = arith.constant 0 : index
    %c0_0 = arith.constant 0 : index
    %0 = memref.load %arg1[%c0, %c0_0] : memref<1x1xf32, #tpu.memory_space<smem>>
    %c0_1 = arith.constant 0 : index
    %c0_2 = arith.constant 0 : index
    %1 = vector.load %arg2[%c0_1, %c0_2] : memref<16x128xf32, #tpu.memory_space<vmem>>, vector<16x128xf32>
    %2 = vector.broadcast %0 : f32 to vector<16x128xf32>
    %3 = arith.divf %1, %2 : vector<16x128xf32>
    %cst = arith.constant -1.280000e+02 : f32
    %cst_3 = arith.constant 1.270000e+02 : f32
    %4 = vector.broadcast %cst : f32 to vector<16x128xf32>
    %5 = arith.maximumf %4, %3 : vector<16x128xf32>
    %6 = vector.broadcast %cst_3 : f32 to vector<16x128xf32>
    %7 = arith.minimumf %6, %5 : vector<16x128xf32>
    %8 = math.roundeven %7 : vector<16x128xf32>
    %9 = vector.broadcast %0 : f32 to vector<16x128xf32>
    %10 = arith.mulf %8, %9 : vector<16x128xf32>
    %c0_4 = arith.constant 0 : index
    %c0_5 = arith.constant 0 : index
    %11 = vector.load %arg3[%c0_4, %c0_5] : memref<16x128xf32, #tpu.memory_space<vmem>>, vector<16x128xf32>
    tpu.vector_store %arg3[%c0_4, %c0_5], %10 {strides = array<i32>} : memref<16x128xf32, #tpu.memory_space<vmem>>, vector<16x128xf32>,
    return
  }
  func.func @transform_0(%arg0: i32) -> (i32, i32) {
    %c0_i32 = arith.constant 0 : i32
    %c0_i32_0 = arith.constant 0 : i32
    %c0_i32_1 = arith.constant 0 : i32
    return %c0_i32, %c0_i32_0 : i32, i32
  }
  func.func @transform_1(%arg0: i32) -> (i32, i32) {
    %c0_i32 = arith.constant 0 : i32
    %c0_i32_0 = arith.constant 0 : i32
    return %arg0, %c0_i32 : i32, i32
  }
  func.func @transform_2(%arg0: i32) -> (i32, i32) {
    %c0_i32 = arith.constant 0 : i32
    %c0_i32_0 = arith.constant 0 : i32
    return %arg0, %c0_i32 : i32, i32
  }
}

</mosaic_0001>

<llo_original>
// kernel: tpu_custom_call.1
$region0: #{tpu_custom_call.1}
  #allocation0 [shape = 'u32[]', space=smem, size = 0x4, offset = 0x4, fixed_abs, tag = 'smem constant byte address 0x4 - core index']
  #allocation1 [shape = 'u32[144,128]{1,0:T(1,128)}', space=vmem, size = 0x12000, scoped, tag = 'internal scratch']
  #allocation2 [shape = 'f32[1,1]{1,0:T(1,128)S(6)}', space=smem, size = 0x200, scoped, tag = 'scoped memory for tpu_custom_call.1']
  %s0 = inlined_call_operand.<no memory space> [shape: f32[1,1], index: 0, kind: input, shape index: {}]
  %s1 = inlined_call_operand.hbm [shape: f32[16,128], index: 1, kind: input, shape index: {}]
  %s2 = inlined_call_operand.hbm [shape: f32[16,128], index: 2, kind: output, shape index: {}]
  %s3 = sld [smem:[#allocation0]]
  $region22: #{tpu_custom_call.1} parent=0
    _
  %s5 = ssub.s32 1, %s3
  %s6 = scalar_select 0, %s5, %s3
  %7 = sst [smem:[#allocation2]] %s0
  $region1: #{tpu_custom_call.1} parent=0
    #allocation3 [shape = 'u8[8192]{0}', space=vmem, size = 0x2000, scoped, tag = 'input window, operand 1, single buffered']
    #allocation4 [shape = 's32[1]{0}', space=sflag, size = 0x4, scoped, tag = 'scoped memory for tpu_custom_call.1']
    #allocation5 [shape = 's32[1]{0}', space=sflag, size = 0x4, scoped, tag = 'scoped memory for tpu_custom_call.1']
    #allocation6 [shape = 'u8[8192]{0}', space=vmem, size = 0x2000, scoped, tag = 'output window, operand 0, single buffered']
    %8 = vsyncpa [#allocation4], 0
    %9 = vsyncpa [#allocation5], 0
    // Predicated region
    $region2: #{tpu_custom_call.1} parent=1 // pred_check
      _
    $region3: #{tpu_custom_call.1} parent=1 // pred_check_branch
      %11 = sbr.rel (0) target = $region5
    $region4: #{tpu_custom_call.1} parent=1 // pred_region
      _
    $region5: #{tpu_custom_call.1} parent=1 // pred_fallthru
      _
    // Predicated region
    $region6: #{tpu_custom_call.1} parent=1 // pred_check
      _
    $region7: #{tpu_custom_call.1} parent=1 // pred_check_branch
      %13 = sbr.rel (0) target = $region9
    $region8: #{tpu_custom_call.1} parent=1 // pred_region
      %s15 = ssub.s32 256, 256
      %16 = vsyncadd [#allocation4], %s15
      %s17 = sshll.u32 [#allocation3], 4
      %s18 = int_to_ptr.vmem [resolvable:$true] %s17
      %23 = dma.hbm_to_vmem [thread:$0]  %s1, 256, %s18, [#allocation4], 128, 128, 8
    $region9: #{tpu_custom_call.1} parent=1 // pred_fallthru
      _
    // Predicated region
    $region10: #{tpu_custom_call.1} parent=1 // pred_check
      _
    $region11: #{tpu_custom_call.1} parent=1 // pred_check_branch
      %25 = sbr.rel (0) target = $region13
    $region12: #{tpu_custom_call.1} parent=1 // pred_region
      %26 = dma.done [#allocation4], 256
    $region13: #{tpu_custom_call.1} parent=1 // pred_fallthru
      _
    %s27 = sld [smem:[#allocation2]]
    %v28 = vld [vmem:[#allocation3] sm:$0xff]
    %v29 = vld [vmem:[#allocation3 + $0x8] sm:$0xff]
    %v30 = vstv %s27
    %v31 = vrcp.pop %v30
    %v32 = vmul.f32 %v28, %v31
    %v33 = vmul.f32 %v29, %v31
    %v34 = vmax.f32 %v32, -128.0
    %v35 = vmax.f32 %v33, -128.0
    %v36 = vmin.f32 %v34, 127.0
    %v37 = vmin.f32 %v35, 127.0
    %v38 = vround.ne.pseudo %v36
    %v39 = vround.ne.pseudo %v37
    %v40 = vmul.f32 %v38, %v30
    %v41 = vmul.f32 %v39, %v30
    %42 = vst [vmem:[#allocation6] sm:$0xff] %v40
    %43 = vst [vmem:[#allocation6 + $0x8] sm:$0xff] %v41
    // Predicated region
    $region14: #{tpu_custom_call.1} parent=1 // pred_check
      _
    $region15: #{tpu_custom_call.1} parent=1 // pred_check_branch
      %45 = sbr.rel (0) target = $region17
    $region16: #{tpu_custom_call.1} parent=1 // pred_region
      %s47 = ssub.s32 256, 256
      %48 = vsyncadd [#allocation5], %s47
      %s49 = sshll.u32 [#allocation6], 4
      %s50 = int_to_ptr.vmem [resolvable:$true] %s49
      %55 = dma.vmem_to_hbm [thread:$0]  %s50, 256, %s2, [#allocation5], 128, 128, 8
    $region17: #{tpu_custom_call.1} parent=1 // pred_fallthru
      _
    // Predicated region
    $region18: #{tpu_custom_call.1} parent=1 // pred_check
      _
    $region19: #{tpu_custom_call.1} parent=1 // pred_check_branch
      %57 = sbr.rel (0) target = $region21
    $region20: #{tpu_custom_call.1} parent=1 // pred_region
      %58 = dma.done [#allocation5], 256
    $region21: #{tpu_custom_call.1} parent=1 // pred_fallthru
      _
    %59 = vsyncpa [#allocation4], 1
    %60 = vsyncpa [#allocation5], 1

</llo_original>
